<compile_context>
chip_gen: v6e
topology: v6e:2x2x1
jax: 0.10.0
libtpu: 0.0.40
codegen_flags: <defaults>
</compile_context>

<pallas_src>
import functools

import jax
import jax.numpy as jnp
from jax.experimental import pallas as pl
from jax.experimental.pallas import tpu as pltpu

IGNORE_LB = 255


def _ce_partial_kernel(logits_ref, labels_ref, out_ref, ciota_ref, *,
                       ignore_lb, hw, tiles_per_split, ragged):
    # logits_ref: (C, TM) native dtype; labels_ref: (1, TM) int32;
    # out_ref:    (1, TM) f32 partial-sum lanes, resident across the tile axis;
    # ciota_ref:  (C, TM) int32 scratch holding the class-index iota.
    j = pl.program_id(2)
    tm = out_ref.shape[-1]

    @pl.when(j == 0)
    def _():
        out_ref[...] = jnp.zeros_like(out_ref)
        # Hoisted class-index iota: filled once per (batch, split) instead of
        # regenerated every grid step (one fewer VALU op per vreg per step).
        ciota_ref[...] = jax.lax.broadcasted_iota(jnp.int32, ciota_ref.shape, 0)

    x = logits_ref[...]                                   # (C, TM) native dtype
    lbl = labels_ref[...]                                 # (1, TM) int32
    valid = lbl != ignore_lb                              # (1, TM) bool

    if ragged:
        # This tile may extend past H*W (partial edge block and/or a clamped,
        # fully-out-of-range tile).  Zero the pad lanes BEFORE exp so
        # undefined VMEM data can never inject NaN/Inf into the lse path.
        px0 = (pl.program_id(1) * tiles_per_split + j) * tm
        lane = jax.lax.broadcasted_iota(jnp.int32, lbl.shape, 1)
        in_range = (px0 + lane) < hw                      # (1, TM) bool
        x = jnp.where(in_range, x, 0)
        valid = jnp.logical_and(valid, in_range)

    # Numerically-stable log-sum-exp over the class (sublane) axis.  The
    # element-wise path stays in the logits' native dtype (bf16 stays packed
    # on v6e/v7x); lse and the per-pixel loss accumulate in f32.
    m = jnp.max(x, axis=0, keepdims=True)                 # (1, TM) native
    e = jnp.exp(x - m)                                    # (C, TM) native
    sum_e = jnp.sum(e.astype(jnp.float32), axis=0, keepdims=True)
    lse = jnp.log(sum_e) + m.astype(jnp.float32)          # (1, TM) f32

    # Gather the logit at the label index via compare-select-sum against the
    # hoisted iota.  NOTE: a valid (non-ignore) label outside [0, C) finds no
    # match and contributes `lse` instead of raising like PyTorch.
    # TODO(synk): optional pl.debug_check for labels >= C under debug mode.
    match = ciota_ref[...] == lbl                         # (C, TM) bool
    x_at_lbl = jnp.sum(jnp.where(match, x, 0).astype(jnp.float32),
                       axis=0, keepdims=True)             # (1, TM) f32

    per_px = jnp.where(valid, lse - x_at_lbl, 0.0)        # (1, TM) f32

    # Pure element-wise fold into the lane-shaped accumulator (VPU only, no
    # XLU reduce and no scalar serialization in the hot loop).
    out_ref[...] += per_px


def _vmem_capacity_bytes(default=64 * 1024 * 1024):
    """Physical VMEM per TensorCore (128 MiB on v5e/v6e, 64 MiB on v7x);
    conservative 64 MiB fallback if the query is unavailable."""
    try:
        cap = int(pltpu.get_tpu_info().vmem_capacity_bytes)
        if cap > 0:
            return cap
    except Exception:
        pass
    return default


def _pick_tile(C, HW, itemsize, vmem_cap):
    """Largest 128-multiple pixel tile whose VMEM working set fits ~45% of the
    chip's VMEM capacity (the scoped limit is set to ~90%, leaving 2x headroom
    over this estimate).

    Sized by BYTES (not lanes) so each grid step DMAs several MB of logits and
    the ~0.35 us fixed per-step overhead stays <10% of step time.  Working set
    per pixel column: double-buffered logits block, the int32 iota scratch,
    ~4 f32 (C, tm)-shaped temporaries, plus labels / accumulator / (1, tm)
    rows; class rows are padded to the 8-sublane tile.
    """
    budget = max(12 * 1024 * 1024, int(vmem_cap * 0.45))
    c_pad = ((C + 7) // 8) * 8
    per_px = c_pad * (2 * itemsize + 4 + 4 * 4) + 48
    tm = (budget // per_px) // 128 * 128
    tm = max(128, tm)
    # No point tiling wider than the pixel row itself.
    tm = min(tm, max(128, (HW // 128) * 128))
    return int(tm)


def normal_loss(logits, labels, ignore_lb=IGNORE_LB, tm=None, splits=None):
    """logits: (N, C, H, W) float (any dtype), labels: (N, H, W) int.

    Returns scalar f32: mean over ALL pixels of the per-pixel cross-entropy,
    where ignored (label == ignore_lb) pixels contribute 0 — exactly PyTorch's
    CrossEntropyLoss(ignore_index, reduction='none') followed by torch.mean
    (i.e. the divisor includes ignored pixels, unlike reduction='mean').
    """
    N, C, H, W = logits.shape
    HW = H * W
    M = N * HW

    # Free, contiguous reshapes only — no transpose, no astype, no pad of the
    # large logits tensor (dtype handling happens inside the kernel).
    x = logits.reshape(N, C, HW)
    y = labels.reshape(N, 1, HW).astype(jnp.int32)

    vmem_cap = _vmem_capacity_bytes()
    if tm is None:
        tm = _pick_tile(C, HW, x.dtype.itemsize, vmem_cap)
    T = pl.cdiv(HW, tm)

    # Split the pixel-tile loop into a leading parallel axis so the v7x
    # megacore stays busy even when N == 1 (harmless on single-TC chips).
    if splits is None:
        splits = 2
    S = max(1, min(splits, T))
    Tc = pl.cdiv(T, S)
    # Ragged if the last tile is partial, or if S*Tc over-covers T (then some
    # (s, j) tiles are fully out of range: clamp their block index and let the
    # in-kernel mask zero their contribution).
    ragged = (HW % tm != 0) or (S * Tc != T)

    if S * Tc == T:
        pix_map = lambda n, s, j: (n, 0, s * Tc + j)
    else:
        pix_map = lambda n, s, j: (n, 0, jnp.minimum(s * Tc + j, T - 1))

    kernel = functools.partial(_ce_partial_kernel, ignore_lb=ignore_lb, hw=HW,
                               tiles_per_split=Tc, ragged=ragged)

    cost = pl.CostEstimate(
        flops=int(6 * N * C * HW),
        transcendentals=int(N * C * HW + N * HW),
        bytes_accessed=int(N * C * HW * x.dtype.itemsize + N * HW * 4
                           + N * S * tm * 4),
    )

    partials = pl.pallas_call(
        kernel,
        out_shape=jax.ShapeDtypeStruct((N * S, 1, tm), jnp.float32),
        grid_spec=pltpu.PrefetchScalarGridSpec(
            num_scalar_prefetch=0,
            grid=(N, S, Tc),
            in_specs=[
                # kernel sees (C, tm): classes on sublanes, pixels on lanes
                pl.BlockSpec((None, C, tm), pix_map),
                # kernel sees (1, tm)
                pl.BlockSpec((None, 1, tm), pix_map),
            ],
            # per-(batch, split) lane-shaped partial sums, resident across j
            out_specs=pl.BlockSpec((None, 1, tm),
                                   lambda n, s, j: (n * S + s, 0, 0)),
            scratch_shapes=[pltpu.VMEM((C, tm), jnp.int32)],
        ),
        compiler_params=pltpu.CompilerParams(
            dimension_semantics=("parallel", "parallel", "arbitrary"),
            vmem_limit_bytes=int(min(vmem_cap * 0.9, vmem_cap - (4 << 20))),
        ),
        cost_estimate=cost,
    )(x, y)

    # Tiny final reduction in JAX (f32).  PyTorch semantics: divide by the
    # TOTAL number of pixels, ignored ones included.
    return jnp.sum(partials) / jnp.float32(M)


def _reference_loss(logits, labels, ignore_lb=IGNORE_LB):
    logp = jax.nn.log_softmax(logits.astype(jnp.float32), axis=1)  # (N,C,H,W)
    valid = labels != ignore_lb
    safe = jnp.where(valid, labels, 0).astype(jnp.int32)
    picked = jnp.take_along_axis(logp, safe[:, None, :, :], axis=1)[:, 0]
    per = jnp.where(valid, -picked, 0.0)
    return jnp.mean(per)


if __name__ == "__main__":
    key = jax.random.PRNGKey(0)
    keys = jax.random.split(key, 9)

    # Test 1: aligned shapes (single tile per batch row, no pixel split).
    N, C, H, W = 2, 4, 16, 16
    logits = jax.random.normal(keys[0], (N, C, H, W), dtype=jnp.float32)
    labels = jax.random.randint(keys[1], (N, H, W), 0, C, dtype=jnp.int32)
    labels = jnp.where(jax.random.bernoulli(keys[2], 0.2, (N, H, W)),
                       IGNORE_LB, labels)
    out = jax.block_until_ready(normal_loss(logits, labels))
    ref = _reference_loss(logits, labels)
    assert jnp.allclose(out, ref, atol=1e-5, rtol=1e-5), (out, ref)

    # Test 2: ragged pixel count + pixel-axis megacore split (T=2, S=2) and a
    # class count that is not a multiple of the sublane tile.
    N2, C2, H2, W2 = 3, 5, 12, 12
    logits2 = jax.random.normal(keys[3], (N2, C2, H2, W2), dtype=jnp.float32)
    labels2 = jax.random.randint(keys[4], (N2, H2, W2), 0, C2, dtype=jnp.int32)
    labels2 = jnp.where(jax.random.bernoulli(keys[5], 0.25, (N2, H2, W2)),
                        IGNORE_LB, labels2)
    out2 = jax.block_until_ready(normal_loss(logits2, labels2))
    ref2 = _reference_loss(logits2, labels2)
    assert jnp.allclose(out2, ref2, atol=1e-5, rtol=1e-5), (out2, ref2)

    # Test 3: N=1 with a forced small tile so T % S != 0 — exercises the
    # clamped index_map for fully-out-of-range tiles and the N==1 split.
    N3, C3, H3, W3 = 1, 6, 16, 20
    logits3 = jax.random.normal(keys[6], (N3, C3, H3, W3), dtype=jnp.float32)
    labels3 = jax.random.randint(keys[7], (N3, H3, W3), 0, C3, dtype=jnp.int32)
    labels3 = jnp.where(jax.random.bernoulli(keys[8], 0.3, (N3, H3, W3)),
                        IGNORE_LB, labels3)
    out3 = jax.block_until_ready(normal_loss(logits3, labels3, tm=128))
    ref3 = _reference_loss(logits3, labels3)
    assert jnp.allclose(out3, ref3, atol=1e-5, rtol=1e-5), (out3, ref3)

    print("KERNEL_OK")
</pallas_src>

<mosaic_0001>
module attributes {stable_mosaic.version = 11 : i64} {
  func.func @_ce_partial_kernel(%arg0: i32, %arg1: i32, %arg2: i32, %arg3: memref<1x4x256xf32, #tpu.memory_space<vmem>>, %arg4: memref<1x1x256xi32, #tpu.memory_space<vmem>>, %arg5: memref<1x1x256xf32, #tpu.memory_space<vmem>>, %arg6: memref<4x256xi32, #tpu.memory_space<vmem>>) attributes {dimension_semantics = [#tpu.dimension_semantics<parallel>, #tpu.dimension_semantics<parallel>, #tpu.dimension_semantics<arbitrary>], iteration_bounds = array<i64: 2, 1, 1>, scalar_prefetch = 0 : i64, scratch_operands = 1 : i64, tpu.core_type = #tpu.core_type<tc>, window_params = [{transform_indices = @transform_0, window_bounds = array<i64: 1, 4, 256>}, {transform_indices = @transform_1, window_bounds = array<i64: 1, 1, 256>}, {transform_indices = @transform_2, window_bounds = array<i64: 1, 1, 256>}]} {
    %c0_i32 = arith.constant 0 : i32
    %0 = arith.cmpi eq, %arg2, %c0_i32 : i32
    %1 = arith.extui %0 : i1 to i32
    %c0_i32_0 = arith.constant 0 : i32
    %2 = arith.cmpi ne, %1, %c0_i32_0 : i32
    scf.if %2 {
      %cst_18 = arith.constant 0.000000e+00 : f32
      %35 = vector.broadcast %cst_18 : f32 to vector<1x256xf32>
      %c0_19 = arith.constant 0 : index
      %c0_20 = arith.constant 0 : index
      %c0_21 = arith.constant 0 : index
      %36 = vector.load %arg5[%c0_19, %c0_20, %c0_21] : memref<1x1x256xf32, #tpu.memory_space<vmem>>, vector<1x1x256xf32>
      %37 = vector.shape_cast %36 : vector<1x1x256xf32> to vector<1x256xf32>
      %38 = vector.shape_cast %35 : vector<1x256xf32> to vector<1x1x256xf32>
      tpu.vector_store %arg5[%c0_19, %c0_20, %c0_21], %38 {strides = array<i32>} : memref<1x1x256xf32, #tpu.memory_space<vmem>>, vector<1x1x256xf32>,
      %39 = tpu.iota {dimensions = array<i32: 0>} : vector<4x256xi32>
      %c0_22 = arith.constant 0 : index
      %c0_23 = arith.constant 0 : index
      %40 = vector.load %arg6[%c0_22, %c0_23] : memref<4x256xi32, #tpu.memory_space<vmem>>, vector<4x256xi32>
      tpu.vector_store %arg6[%c0_22, %c0_23], %39 {strides = array<i32>} : memref<4x256xi32, #tpu.memory_space<vmem>>, vector<4x256xi32>,
    } else {
    }
    %c0 = arith.constant 0 : index
    %c0_1 = arith.constant 0 : index
    %c0_2 = arith.constant 0 : index
    %3 = vector.load %arg3[%c0, %c0_1, %c0_2] : memref<1x4x256xf32, #tpu.memory_space<vmem>>, vector<1x4x256xf32>
    %4 = vector.shape_cast %3 : vector<1x4x256xf32> to vector<4x256xf32>
    %c0_3 = arith.constant 0 : index
    %c0_4 = arith.constant 0 : index
    %c0_5 = arith.constant 0 : index
    %5 = vector.load %arg4[%c0_3, %c0_4, %c0_5] : memref<1x1x256xi32, #tpu.memory_space<vmem>>, vector<1x1x256xi32>
    %6 = vector.shape_cast %5 : vector<1x1x256xi32> to vector<1x256xi32>
    %c255_i32 = arith.constant 255 : i32
    %7 = vector.broadcast %c255_i32 : i32 to vector<1x256xi32>
    %8 = arith.cmpi ne, %6, %7 : vector<1x256xi32>
    %cst = arith.constant dense<0xFF800000> : vector<256xf32>
    %9 = vector.multi_reduction <maximumf>, %4, %cst [0] : vector<4x256xf32> to vector<256xf32>
    %10 = vector.shape_cast %9 : vector<256xf32> to vector<1x256xf32>
    %11 = vector.broadcast %10 : vector<1x256xf32> to vector<4x256xf32>
    %12 = arith.subf %4, %11 : vector<4x256xf32>
    %13 = math.exp %12 : vector<4x256xf32>
    %cst_6 = arith.constant dense<0.000000e+00> : vector<256xf32>
    %14 = vector.multi_reduction <add>, %13, %cst_6 [0] : vector<4x256xf32> to vector<256xf32>
    %15 = vector.shape_cast %14 : vector<256xf32> to vector<1x256xf32>
    %16 = math.log %15 : vector<1x256xf32>
    %17 = arith.addf %16, %10 : vector<1x256xf32>
    %c0_7 = arith.constant 0 : index
    %c0_8 = arith.constant 0 : index
    %18 = vector.load %arg6[%c0_7, %c0_8] : memref<4x256xi32, #tpu.memory_space<vmem>>, vector<4x256xi32>
    %19 = vector.broadcast %6 : vector<1x256xi32> to vector<4x256xi32>
    %20 = arith.cmpi eq, %18, %19 : vector<4x256xi32>
    %c0_i32_9 = arith.constant 0 : i32
    %21 = arith.sitofp %c0_i32_9 : i32 to f32
    %22 = vector.broadcast %21 : f32 to vector<4x256xf32>
    %23 = arith.select %20, %4, %22 : vector<4x256xi1>, vector<4x256xf32>
    %cst_10 = arith.constant dense<0.000000e+00> : vector<256xf32>
    %24 = vector.multi_reduction <add>, %23, %cst_10 [0] : vector<4x256xf32> to vector<256xf32>
    %25 = vector.shape_cast %24 : vector<256xf32> to vector<1x256xf32>
    %26 = arith.subf %17, %25 : vector<1x256xf32>
    %cst_11 = arith.constant 0.000000e+00 : f32
    %27 = vector.broadcast %cst_11 : f32 to vector<1x256xf32>
    %28 = arith.select %8, %26, %27 : vector<1x256xi1>, vector<1x256xf32>
    %c0_12 = arith.constant 0 : index
    %c0_13 = arith.constant 0 : index
    %c0_14 = arith.constant 0 : index
    %29 = vector.load %arg5[%c0_12, %c0_13, %c0_14] : memref<1x1x256xf32, #tpu.memory_space<vmem>>, vector<1x1x256xf32>
    %30 = vector.shape_cast %29 : vector<1x1x256xf32> to vector<1x256xf32>
    %31 = arith.addf %30, %28 : vector<1x256xf32>
    %c0_15 = arith.constant 0 : index
    %c0_16 = arith.constant 0 : index
    %c0_17 = arith.constant 0 : index
    %32 = vector.load %arg5[%c0_15, %c0_16, %c0_17] : memref<1x1x256xf32, #tpu.memory_space<vmem>>, vector<1x1x256xf32>
    %33 = vector.shape_cast %32 : vector<1x1x256xf32> to vector<1x256xf32>
    %34 = vector.shape_cast %31 : vector<1x256xf32> to vector<1x1x256xf32>
    tpu.vector_store %arg5[%c0_15, %c0_16, %c0_17], %34 {strides = array<i32>} : memref<1x1x256xf32, #tpu.memory_space<vmem>>, vector<1x1x256xf32>,
    return
  }
  func.func @transform_0(%arg0: i32, %arg1: i32, %arg2: i32) -> (i32, i32, i32) {
    %c1_i32 = arith.constant 1 : i32
    %0 = arith.muli %arg1, %c1_i32 : i32
    %1 = arith.addi %0, %arg2 : i32
    %c0_i32 = arith.constant 0 : i32
    %c0_i32_0 = arith.constant 0 : i32
    return %arg0, %c0_i32, %1 : i32, i32, i32
  }
  func.func @transform_1(%arg0: i32, %arg1: i32, %arg2: i32) -> (i32, i32, i32) {
    %c1_i32 = arith.constant 1 : i32
    %0 = arith.muli %arg1, %c1_i32 : i32
    %1 = arith.addi %0, %arg2 : i32
    %c0_i32 = arith.constant 0 : i32
    %c0_i32_0 = arith.constant 0 : i32
    return %arg0, %c0_i32, %1 : i32, i32, i32
  }
  func.func @transform_2(%arg0: i32, %arg1: i32, %arg2: i32) -> (i32, i32, i32) {
    %c1_i32 = arith.constant 1 : i32
    %0 = arith.muli %arg0, %c1_i32 : i32
    %1 = arith.addi %0, %arg1 : i32
    %c0_i32 = arith.constant 0 : i32
    %c0_i32_0 = arith.constant 0 : i32
    %c0_i32_1 = arith.constant 0 : i32
    return %1, %c0_i32, %c0_i32_0 : i32, i32, i32
  }
}

</mosaic_0001>

<llo_original>
// kernel: tpu_custom_call.1
$region0: #{tpu_custom_call.1}
  #allocation0 [shape = 'u32[]', space=smem, size = 0x4, offset = 0x4, fixed_abs, tag = 'smem constant byte address 0x4 - core index']
  #allocation1 [shape = 'u32[144,128]{1,0:T(1,128)}', space=vmem, size = 0x12000, scoped, tag = 'internal scratch']
  #allocation2 [shape = 's32[4,256]{1,0:T(4,128)}', space=vmem, size = 0x1000, scoped, tag = 'scratch operand']
  %s0 = inlined_call_operand.hbm [shape: f32[2,4,256], index: 0, kind: input, shape index: {}]
  %s1 = inlined_call_operand.hbm [shape: s32[2,1,256], index: 1, kind: input, shape index: {}]
  %s2 = inlined_call_operand.hbm [shape: f32[2,1,256], index: 2, kind: output, shape index: {}]
  %s3 = sld [smem:[#allocation0]]
  $region53: #{tpu_custom_call.1} parent=0
    _
  %s5 = ssub.s32 1, %s3
  %s6 = scalar_select 0, %s5, %s3
  $region1: #{tpu_custom_call.1} parent=0
    #allocation3 [shape = 'u8[8192]{0}', space=vmem, size = 0x2000, scoped, tag = 'input window, operand 0']
    #allocation4 [shape = 's32[2]{0}', space=sflag, size = 0x8, scoped, tag = 'scoped memory for tpu_custom_call.1']
    #allocation5 [shape = 's32[2]{0}', space=sflag, size = 0x8, scoped, tag = 'scoped memory for tpu_custom_call.1']
    #allocation6 [shape = 'u8[2048]{0}', space=vmem, size = 0x800, scoped, tag = 'input window, operand 1']
    #allocation7 [shape = 's32[2]{0}', space=sflag, size = 0x8, scoped, tag = 'scoped memory for tpu_custom_call.1']
    #allocation8 [shape = 'u8[2048]{0}', space=vmem, size = 0x800, scoped, tag = 'output window, operand 0']
    %7 = vsyncpa [#allocation4], 0
    %s8 = scalar_lea.sflag [#allocation4], 1
    %9 = vsyncpa %s8, 0
    %10 = vsyncpa [#allocation7], 0
    %s11 = scalar_lea.sflag [#allocation7], 1
    %12 = vsyncpa %s11, 0
    %13 = vsyncpa [#allocation5], 0
    %s14 = scalar_lea.sflag [#allocation5], 1
    %15 = vsyncpa %s14, 0
    loop: start=0, step=1, limit=4
    $region2: #{tpu_custom_call.1} parent=1 // loop_pre_header
      _
    $region3: #{tpu_custom_call.1} parent=1 // loop_header
      %s17 = sphi 0, %s21
      %p18 = scmp.ge.s32.totalorder %s17, 4
      %s24 = sphi 0, %s43
      %s25 = sphi 0, %s39
      %s26 = sphi 0, %s35
      %s27 = sphi 0, %s24
      %s28 = sphi 0, %s25
      %s29 = sphi 0, %s26
      %s30 = sphi 0, %s27
      %s31 = sphi 0, %s28
      %s32 = sphi 0, %s29
      %s50 = sphi 0, %s52
      %s53 = sphi 0, %s50
      %s54 = sphi 0, %s53
      %s70 = sphi 0, %s54
      %s80 = sphi 0, %s82
      %s83 = sphi 0, %s80
      %s84 = sphi 0, %s83
      %s100 = sphi 0, %s84
      %s108 = sphi 0, %s110
      %s111 = sphi 0, %s108
      %s112 = sphi 0, %s111
      %s128 = sphi 0, %s112
    $region4: #{tpu_custom_call.1} parent=1 // loop_header_branch
      %20 = sbr.rel (%p18) target = $region8
    $region5: #{tpu_custom_call.1} parent=1 // loop_body
      %s22 = ssub.s32 %s17, 1
      %s23 = ssub.s32 %s17, 2
      %s33 = sadd.s32 1, %s26
      %p34 = scmp.ge.s32.totalorder %s33, 1
      %s35 = scalar_select %p34, 0, %s33
      %s36 = sadd.s32 1, %s25
      %s37 = scalar_select %p34, %s36, %s25
      %p38 = scmp.ge.s32.totalorder %s37, 1
      %s39 = scalar_select %p38, 0, %s37
      %s40 = sadd.s32 1, %s24
      %s41 = scalar_select %p38, %s40, %s24
      %p42 = scmp.ge.s32.totalorder %s41, 2
      %s43 = scalar_select %p42, 0, %s41
      %s44 = sadd.s32 %s25, %s26
      %s45 = sadd.s32 %s39, %s35
      %s46 = ssub.s32 %s24, %s43
      %s47 = ssub.s32 %s44, %s45
      %s48 = sor.u32 %s46, %s47
      %p49 = scmp.eq.s32.totalorder %s48, 0
      %s51 = sadd.s32 %s50, 1
      %s52 = scalar_select %p49, %s50, %s51
      %p55 = pneg %p49
      %p56 = scmp.eq.s32.totalorder %s17, 1
      %p57 = por %p55, %p56
      %p58 = scmp.ne.s32.totalorder %s50, %s53
      %p59 = scmp.eq.s32.totalorder %s17, 0
      %p60 = por %p58, %p59
      %p61 = scmp.ne.s32.totalorder %s50, %s53
      %p62 = scmp.eq.s32.totalorder %s22, 1
      %p63 = por %p61, %p62
      %p64 = scmp.ne.s32.totalorder %s53, %s54
      %p65 = scmp.eq.s32.totalorder %s22, 0
      %p66 = por %p64, %p65
      %p67 = scmp.ne.s32.totalorder %s53, %s54
      %p68 = scmp.eq.s32.totalorder %s23, 1
      %p69 = por %p67, %p68
      %p71 = scmp.ne.s32.totalorder %s54, %s70
      %p72 = scmp.eq.s32.totalorder %s23, 0
      %p73 = por %p71, %p72
      %s74 = sadd.s32 %s25, %s26
      %s75 = sadd.s32 %s39, %s35
      %s76 = ssub.s32 %s24, %s43
      %s77 = ssub.s32 %s74, %s75
      %s78 = sor.u32 %s76, %s77
      %p79 = scmp.eq.s32.totalorder %s78, 0
      %s81 = sadd.s32 %s80, 1
      %s82 = scalar_select %p79, %s80, %s81
      %p85 = pneg %p79
      %p86 = scmp.eq.s32.totalorder %s17, 1
      %p87 = por %p85, %p86
      %p88 = scmp.ne.s32.totalorder %s80, %s83
      %p89 = scmp.eq.s32.totalorder %s17, 0
      %p90 = por %p88, %p89
      %p91 = scmp.ne.s32.totalorder %s80, %s83
      %p92 = scmp.eq.s32.totalorder %s22, 1
      %p93 = por %p91, %p92
      %p94 = scmp.ne.s32.totalorder %s83, %s84
      %p95 = scmp.eq.s32.totalorder %s22, 0
      %p96 = por %p94, %p95
      %p97 = scmp.ne.s32.totalorder %s83, %s84
      %p98 = scmp.eq.s32.totalorder %s23, 1
      %p99 = por %p97, %p98
      %p101 = scmp.ne.s32.totalorder %s84, %s100
      %p102 = scmp.eq.s32.totalorder %s23, 0
      %p103 = por %p101, %p102
      %s104 = sadd.s32 %s24, %s25
      %s105 = sadd.s32 %s43, %s39
      %s106 = ssub.s32 %s104, %s105
      %p107 = scmp.eq.s32.totalorder %s106, 0
      %s109 = sadd.s32 %s108, 1
      %s110 = scalar_select %p107, %s108, %s109
      %p113 = pneg %p107
      %p114 = scmp.eq.s32.totalorder %s17, 1
      %p115 = por %p113, %p114
      %p116 = scmp.ne.s32.totalorder %s108, %s111
      %p117 = scmp.eq.s32.totalorder %s17, 0
      %p118 = por %p116, %p117
      %p119 = scmp.ne.s32.totalorder %s108, %s111
      %p120 = scmp.eq.s32.totalorder %s22, 1
      %p121 = por %p119, %p120
      %p122 = scmp.ne.s32.totalorder %s111, %s112
      %p123 = scmp.eq.s32.totalorder %s22, 0
      %p124 = por %p122, %p123
      %p125 = scmp.ne.s32.totalorder %s111, %s112
      %p126 = scmp.eq.s32.totalorder %s23, 1
      %p127 = por %p125, %p126
      %p129 = scmp.ne.s32.totalorder %s112, %s128
      %p130 = scmp.eq.s32.totalorder %s23, 0
      %p131 = por %p129, %p130
      %p132 = scmp.le.s32.totalorder 1, %s17
      %p133 = scmp.lt.s32.totalorder %s17, 3
      %p134 = pnand %p132, %p133
      %p135 = pneg %p134
      // Predicated region
      $region9: #{tpu_custom_call.1} parent=5 // pred_check
        _
      $region10: #{tpu_custom_call.1} parent=5 // pred_check_branch
        %137 = sbr.rel (%p134) target = $region12
      $region11: #{tpu_custom_call.1} parent=5 // pred_region
        %s138 = ssub.s32 %s17, 1
      $region12: #{tpu_custom_call.1} parent=5 // pred_fallthru
        _
      %p139 = scmp.lt.s32.totalorder %s17, 2
      // Predicated region
      $region13: #{tpu_custom_call.1} parent=5 // pred_check
        %p140 = pneg %p139
      $region14: #{tpu_custom_call.1} parent=5 // pred_check_branch
        %142 = sbr.rel (%p140) target = $region16
      $region15: #{tpu_custom_call.1} parent=5 // pred_region
        // Predicated region
        $region17: #{tpu_custom_call.1} parent=15 // pred_check
          %p143 = pneg %p60
        $region18: #{tpu_custom_call.1} parent=15 // pred_check_branch
          %145 = sbr.rel (%p143) target = $region20
        $region19: #{tpu_custom_call.1} parent=15 // pred_region
          %s146 = sand.u32 %s50, 1
          %s147 = scalar_lea.sflag [#allocation4], %s146
          %s148 = sand.u32 %s50, 1
          %s149 = smul.addr %s148, 8
          %s150 = scalar_lea.vmem [#allocation3], %s149
          %s151 = sadd.s32 %s25, %s26
          %s152 = smul.u32 2, %s151
          %s154 = ssub.s32 128, 128
          %155 = vsyncadd %s147, %s154
          %s156 = smul.addr %s24, 2
          %s157 = sadd.s32 %s152, %s156
          %s158 = smul.addr %s157, 64
          %s159 = scalar_lea.hbm %s0, %s158
          %s161 = sshll.u32 %s150, 4
          %s162 = int_to_ptr.vmem [resolvable:$true] %s161
          %164 = dma.hbm_to_vmem [thread:$0]  %s159, 128, %s162, %s147
        $region20: #{tpu_custom_call.1} parent=15 // pred_fallthru
          _
        // Predicated region
        $region21: #{tpu_custom_call.1} parent=15 // pred_check
          %p165 = pneg %p90
        $region22: #{tpu_custom_call.1} parent=15 // pred_check_branch
          %167 = sbr.rel (%p165) target = $region24
        $region23: #{tpu_custom_call.1} parent=15 // pred_region
          %s168 = sand.u32 %s80, 1
          %s169 = scalar_lea.sflag [#allocation7], %s168
          %s170 = sand.u32 %s80, 1
          %s171 = smul.addr %s170, 2
          %s172 = scalar_lea.vmem [#allocation6], %s171
          %s173 = sadd.s32 %s25, %s26
          %s174 = smul.u32 2, %s173
          %s176 = ssub.s32 32, 32
          %177 = vsyncadd %s169, %s176
          %s178 = smul.addr %s24, 2
          %s179 = sadd.s32 %s174, %s178
          %s180 = smul.addr %s179, 16
          %s181 = scalar_lea.hbm %s1, %s180
          %s183 = sshll.u32 %s172, 4
          %s184 = int_to_ptr.vmem [resolvable:$true] %s183
          %186 = dma.hbm_to_vmem [thread:$0]  %s181, 32, %s184, %s169
        $region24: #{tpu_custom_call.1} parent=15 // pred_fallthru
          _
      $region16: #{tpu_custom_call.1} parent=5 // pred_fallthru
        _
      %p187 = scmp.le.s32.totalorder 1, %s17
      %p188 = scmp.lt.s32.totalorder %s17, 3
      %p189 = pnand %p187, %p188
      %p190 = pneg %p189
      // Predicated region
      $region25: #{tpu_custom_call.1} parent=5 // pred_check
        _
      $region26: #{tpu_custom_call.1} parent=5 // pred_check_branch
        %192 = sbr.rel (%p189) target = $region28
      $region27: #{tpu_custom_call.1} parent=5 // pred_region
        %s193 = ssub.s32 %s17, 1
        %s194 = sand.u32 %s53, 1
        %s195 = scalar_lea.sflag [#allocation4], %s194
        %s196 = sand.u32 %s53, 1
        %s197 = smul.addr %s196, 8
        %s198 = scalar_lea.vmem [#allocation3], %s197
        // Predicated region
        $region29: #{tpu_custom_call.1} parent=27 // pred_check
          %p199 = pneg %p66
        $region30: #{tpu_custom_call.1} parent=27 // pred_check_branch
          %201 = sbr.rel (%p199) target = $region32
        $region31: #{tpu_custom_call.1} parent=27 // pred_region
          %202 = dma.done %s195, 128
        $region32: #{tpu_custom_call.1} parent=27 // pred_fallthru
          _
        %s203 = sand.u32 %s83, 1
        %s204 = scalar_lea.sflag [#allocation7], %s203
        %s205 = sand.u32 %s83, 1
        %s206 = smul.addr %s205, 2
        %s207 = scalar_lea.vmem [#allocation6], %s206
        // Predicated region
        $region33: #{tpu_custom_call.1} parent=27 // pred_check
          %p208 = pneg %p96
        $region34: #{tpu_custom_call.1} parent=27 // pred_check_branch
          %210 = sbr.rel (%p208) target = $region36
        $region35: #{tpu_custom_call.1} parent=27 // pred_region
          %211 = dma.done %s204, 32
        $region36: #{tpu_custom_call.1} parent=27 // pred_fallthru
          _
        %s212 = sand.u32 %s53, 1
        %s213 = scalar_lea.sflag [#allocation4], %s212
        %s214 = sand.u32 %s53, 1
        %s215 = smul.addr %s214, 8
        %s216 = scalar_lea.vmem [#allocation3], %s215
        %p217 = pneg %p66
        %p218 = pneg %p63
        %s219 = sand.u32 %s83, 1
        %s220 = scalar_lea.sflag [#allocation7], %s219
        %s221 = sand.u32 %s83, 1
        %s222 = smul.addr %s221, 2
        %s223 = scalar_lea.vmem [#allocation6], %s222
        %p224 = pneg %p96
        %p225 = pneg %p93
        %p226 = pneg %p124
        %p227 = pneg %p121
        %s228 = sand.u32 %s111, 1
        %s229 = scalar_lea.sflag [#allocation5], %s228
        %s230 = sand.u32 %s111, 1
        %s231 = smul.addr %s230, 2
        %s232 = scalar_lea.vmem [#allocation8], %s231
        %s233 = sadd.s32 %s28, %s29
        %s234 = smul.u32 2, %s233
        %s235 = sadd.s32 %s28, %s29
        %s236 = smul.u32 2, %s235
        %s237 = sadd.s32 %s27, %s28
        %p238 = scmp.eq.s32.totalorder %s29, 0
        // Predicated region
        $region37: #{tpu_custom_call.1} parent=27 // pred_check
          %p239 = pneg %p238
        $region38: #{tpu_custom_call.1} parent=27 // pred_check_branch
          %241 = sbr.rel (%p239) target = $region40
        $region39: #{tpu_custom_call.1} parent=27 // pred_region
          %v242 = vlaneseq
          %vm243 = vcmp.ge.s32.totalorder %v242, 0
          %vm244 = vcmp.lt.s32.totalorder %v242, 256
          %vm245 = vmand %vm243, %vm244
          %246 = vst.msk [vmem:[%s232] sm:$0x3] %vm245, 0.0
          %v247 = vlaneseq
          %v248 = vshrl.u32 %v247, 7
          %v250 = vunpack.c.l.s4 839922192
          %v251 = vunpack.c.0.s8 %v250
          %v252 = vlaneseq
          %v253 = vshrl.u32 %v252, 7
          %v254 = vsub.s32 %v251, %v253
          %v255 = vrot.slane %v248, %v254
          %256 = vst [vmem:[#allocation2] sm:$0xff] %v255
        $region40: #{tpu_custom_call.1} parent=27 // pred_fallthru
          _
        %v257 = vld [vmem:[%s198] sm:$0xff]
        %v258 = vld [vmem:[%s207] sm:$0x3]
        %vm259 = vcmp.ne.s32.totalorder %v258, 255
        %v261 = vcombine.high %v257, %v257
        %vm263 = vcmask 1043456
        %v264 = vsel %vm263, %v257, -inf
        %v265 = vrot.slane %v264, 4
        %v266 = vmax.f32 %v264, %v265
        %v267 = vrot.slane %v266, 2
        %v268 = vmax.f32 %v266, %v267
        %v269 = vrot.slane %v268, 1
        %v270 = vmax.f32 %v268, %v269
        %v271 = vsel %vm263, %v261, -inf
        %v272 = vrot.slane %v271, 4
        %v273 = vmax.f32 %v271, %v272
        %v274 = vrot.slane %v273, 2
        %v275 = vmax.f32 %v273, %v274
        %v276 = vrot.slane %v275, 1
        %v277 = vmax.f32 %v275, %v276
        %v280 = vcombine.low %v270, %v277
        %v282 = vsub.f32 %v257, %v280
        %v283 = vmul.f32 %v282, 1.442695
        %v284 = vpow.pop %v283
        %v286 = vcombine.high %v284, %v284
        %v288 = vsel %vm263, %v284, 0.0
        %v289 = vrot.slane %v288, 4
        %v290 = vadd.f32 %v288, %v289
        %v291 = vrot.slane %v290, 2
        %v292 = vadd.f32 %v290, %v291
        %v293 = vrot.slane %v292, 1
        %v294 = vadd.f32 %v292, %v293
        %v295 = vsel %vm263, %v286, 0.0
        %v296 = vrot.slane %v295, 4
        %v297 = vadd.f32 %v295, %v296
        %v298 = vrot.slane %v297, 2
        %v299 = vadd.f32 %v297, %v298
        %v300 = vrot.slane %v299, 1
        %v301 = vadd.f32 %v299, %v300
        %v302 = vlog2.pop %v294
        %v303 = vmul.f32 %v302, 0.6931472
        %v304 = vlog2.pop %v301
        %v305 = vmul.f32 %v304, 0.6931472
        %v306 = vadd.f32 %v303, %v270
        %v307 = vadd.f32 %v305, %v277
        %v308 = vld [vmem:[#allocation2] sm:$0xff]
        %v309 = vlaneseq
        %v310 = vshrl.u32 %v309, 7
        %v311 = vsub.s32 0, %v310
        %v312 = vrot.slane %v258, %v311
        %v313 = vlaneseq
        %v314 = vshrl.u32 %v313, 7
        %v315 = vsub.s32 1, %v314
        %v316 = vrot.slane %v258, %v315
        %v317 = vcombine.low %v312, %v316
        %vm318 = vcmp.eq.s32.totalorder %v308, %v317
        %v319 = vsel %vm318, %v257, 0.0
        %v321 = vcombine.high %v319, %v319
        %v323 = vsel %vm263, %v319, 0.0
        %v324 = vrot.slane %v323, 4
        %v325 = vadd.f32 %v323, %v324
        %v326 = vrot.slane %v325, 2
        %v327 = vadd.f32 %v325, %v326
        %v328 = vrot.slane %v327, 1
        %v329 = vadd.f32 %v327, %v328
        %v330 = vsel %vm263, %v321, 0.0
        %v331 = vrot.slane %v330, 4
        %v332 = vadd.f32 %v330, %v331
        %v333 = vrot.slane %v332, 2
        %v334 = vadd.f32 %v332, %v333
        %v335 = vrot.slane %v334, 1
        %v336 = vadd.f32 %v334, %v335
        %v337 = vsub.f32 %v306, %v329
        %v338 = vsub.f32 %v307, %v336
        %v341 = vcombine.low %v337, %v338
        %v343 = vunpack.c.l.s4 1966171168
        %v344 = vunpack.c.0.s8 %v343
        %v345 = vlaneseq
        %v346 = vshrl.u32 %v345, 7
        %v347 = vsub.s32 %v344, %v346
        %v348 = vrot.slane %v341, %v347
        %v350 = vunpack.c.l.s4 1966171168
        %v351 = vunpack.c.0.s8 %v350
        %v352 = vlaneseq
        %v353 = vshrl.u32 %v352, 7
        %v354 = vsub.s32 %v351, %v353
        %v355 = vrot.slane %v348, %v354
        %v357 = vsel %vm259, %v355, 0.0
        %v358 = vld [vmem:[%s232] sm:$0x3]
        %v359 = vadd.f32 %v358, %v357
        %v360 = vlaneseq
        %vm361 = vcmp.ge.s32.totalorder %v360, 0
        %vm362 = vcmp.lt.s32.totalorder %v360, 256
        %vm363 = vmand %vm361, %vm362
        %364 = vst.msk [vmem:[%s232] sm:$0x3] %vm363, %v359
        %s365 = sand.u32 %s111, 1
        %s366 = scalar_lea.sflag [#allocation5], %s365
        %s367 = sand.u32 %s111, 1
        %s368 = smul.addr %s367, 2
        %s369 = scalar_lea.vmem [#allocation8], %s368
        // Predicated region
        $region41: #{tpu_custom_call.1} parent=27 // pred_check
          %p370 = pneg %p121
        $region42: #{tpu_custom_call.1} parent=27 // pred_check_branch
          %372 = sbr.rel (%p370) target = $region44
        $region43: #{tpu_custom_call.1} parent=27 // pred_region
          %s373 = sadd.s32 %s27, %s28
          %s375 = ssub.s32 32, 32
          %376 = vsyncadd %s366, %s375
          %s377 = smul.addr %s373, 2
          %s378 = smul.addr %s377, 16
          %s379 = scalar_lea.hbm %s2, %s378
          %s381 = sshll.u32 %s369, 4
          %s382 = int_to_ptr.vmem [resolvable:$true] %s381
          %384 = dma.vmem_to_hbm [thread:$0]  %s382, 32, %s379, %s366
        $region44: #{tpu_custom_call.1} parent=27 // pred_fallthru
          _
      $region28: #{tpu_custom_call.1} parent=5 // pred_fallthru
        _
      %p385 = scmp.le.s32.totalorder 2, %s17
      // Predicated region
      $region45: #{tpu_custom_call.1} parent=5 // pred_check
        %p386 = pneg %p385
      $region46: #{tpu_custom_call.1} parent=5 // pred_check_branch
        %388 = sbr.rel (%p386) target = $region48
      $region47: #{tpu_custom_call.1} parent=5 // pred_region
        %s389 = ssub.s32 %s17, 2
        // Predicated region
        $region49: #{tpu_custom_call.1} parent=47 // pred_check
          %p390 = pneg %p127
        $region50: #{tpu_custom_call.1} parent=47 // pred_check_branch
          %392 = sbr.rel (%p390) target = $region52
        $region51: #{tpu_custom_call.1} parent=47 // pred_region
          %s393 = sand.u32 %s112, 1
          %s394 = scalar_lea.sflag [#allocation5], %s393
          %s395 = sand.u32 %s112, 1
          %s396 = smul.addr %s395, 2
          %s397 = scalar_lea.vmem [#allocation8], %s396
          %398 = dma.done %s394, 32
        $region52: #{tpu_custom_call.1} parent=47 // pred_fallthru
          _
      $region48: #{tpu_custom_call.1} parent=5 // pred_fallthru
        _
    $region6: #{tpu_custom_call.1} parent=1 // loop_footer
      %s21 = sadd.s32 1, %s17
    $region7: #{tpu_custom_call.1} parent=1 // loop_footer_branch
      %16 = sbr.rel target = $region3
    $region8: #{tpu_custom_call.1} parent=1 // loop_exit
      _
    %399 = vsyncpa [#allocation4], 1
    %s400 = scalar_lea.sflag [#allocation4], 1
    %401 = vsyncpa %s400, 1
    %402 = vsyncpa [#allocation7], 1
    %s403 = scalar_lea.sflag [#allocation7], 1
    %404 = vsyncpa %s403, 1
    %405 = vsyncpa [#allocation5], 1
    %s406 = scalar_lea.sflag [#allocation5], 1
    %407 = vsyncpa %s406, 1

</llo_original>
